<compile_context>
chip_gen: v5e
topology: v5e:2x2
jax: 0.10.0
libtpu: 0.0.40
codegen_flags: <defaults>
</compile_context>

<pallas_src>
import functools
from typing import NamedTuple

import jax
import jax.numpy as jnp
from jax.experimental import pallas as pl
from jax.experimental.pallas import tpu as pltpu


class PackedParams(NamedTuple):
    w_zr: jax.Array   # (Np, H+F, 2H) mm_dtype : [[Wzh|Wrh],[Wzx|Wrx]]
    b_zr: jax.Array   # (Np, 1,   2H) f32      : [bz | br]
    w_t:  jax.Array   # (Np, H+F, H)  mm_dtype : [[Wth],[Wtx]]
    b_t:  jax.Array   # (Np, 1,   H)  f32
    w_o:  jax.Array   # (Np, H,   F)  mm_dtype
    b_o:  jax.Array   # (Np, 1,   F)  f32


DEFAULT_VMEM_TILE_BUDGET = 28 * 1024 * 1024   # ~60% of the 48 MiB scoped limit we request


def _round_up(a, m):
    return ((a + m - 1) // m) * m


def _per_node_vmem_bytes(B, F, H, w_bytes):
    """Rough per-node VMEM footprint of one grid step (double-buffered I/O + live temps)."""
    HF = H + F
    inputs = (B * HF * 4                                # sx (f32)
              + HF * 2 * H * w_bytes + 2 * H * 4        # w_zr, b_zr
              + HF * H * w_bytes + H * 4                # w_t,  b_t
              + H * F * w_bytes + F * 4)                # w_o,  b_o
    outputs = B * (F + H) * 4
    temps = B * (10 * H + 4 * F) * 4                    # gates, rsx, hHat, h, o ...
    return 2 * (inputs + outputs) + temps


def choose_tile_nodes(n_node, batch_size, dim_feature, dim_hidden,
                      mm_dtype=jnp.bfloat16,
                      vmem_tile_budget=DEFAULT_VMEM_TILE_BUDGET):
    """Pick node-tile T from the VMEM budget (sized for v7x, the smallest-VMEM chip)."""
    w_bytes = jnp.dtype(mm_dtype).itemsize
    per_node = _per_node_vmem_bytes(batch_size, dim_feature, dim_hidden, w_bytes)
    t_max = max(8, vmem_tile_budget // per_node)
    np8 = _round_up(n_node, 8)
    if np8 <= t_max:
        # Everything fits one tile; split in two when it's cheap so the "parallel"
        # node axis can still shard across v7x's two TensorCores.
        if np8 >= 256 and (np8 // 2) % 128 == 0:
            return np8 // 2
        return np8
    # Large node counts: biggest 8-aligned tile under budget (amortizes the ~0.35us/step
    # overhead and keeps per-step DMAs near streaming efficiency).
    return max(8, (t_max // 8) * 8)


def pack_params(params, batch_size, *, mm_dtype=jnp.bfloat16, tile_nodes=None,
                vmem_tile_budget=DEFAULT_VMEM_TILE_BUDGET):
    """One-time weight packing/casting/padding.  Call once, reuse for every forward pass."""
    (wzh, wzx, bz, wrh, wrx, br, wth, wtx, bt, wo, bo) = params
    N, H, _ = wzh.shape
    F = wzx.shape[1]

    if tile_nodes is None:
        T = choose_tile_nodes(N, batch_size, F, H, mm_dtype, vmem_tile_budget)
    else:
        T = max(8, _round_up(int(tile_nodes), 8))   # keep node-tiled output blocks 8-aligned
    Np = _round_up(N, T)

    # Fused (H+F)-deep gate weights.
    w_zr = jnp.concatenate(
        [jnp.concatenate([wzh, wrh], axis=-1),      # (N, H, 2H)  S-side rows
         jnp.concatenate([wzx, wrx], axis=-1)],     # (N, F, 2H)  x-side rows
        axis=1).astype(mm_dtype)                    # (N, H+F, 2H)
    b_zr = jnp.concatenate([bz, br], axis=-1).astype(jnp.float32)      # (N, 1, 2H)
    w_t = jnp.concatenate([wth, wtx], axis=1).astype(mm_dtype)         # (N, H+F, H)
    b_t = bt.astype(jnp.float32)                                       # (N, 1, H)
    w_o = wo.astype(mm_dtype)                                          # (N, H, F)
    b_o = bo.astype(jnp.float32)                                       # (N, 1, F)

    pad = Np - N
    if pad:
        pad_n = lambda a: jnp.pad(a, ((0, pad), (0, 0), (0, 0)))
        w_zr, b_zr, w_t, b_t, w_o, b_o = map(pad_n, (w_zr, b_zr, w_t, b_t, w_o, b_o))

    packed = PackedParams(w_zr=w_zr, b_zr=b_zr, w_t=w_t, b_t=b_t, w_o=w_o, b_o=b_o)
    return packed, T


def _grnn_prop_kernel(sx_ref, w_zr_ref, b_zr_ref, w_t_ref, b_t_ref,
                      w_o_ref, b_o_ref, o_ref, h_ref, *, dim_hidden, mm_dtype):
    H = dim_hidden
    sx = sx_ref[...]                          # (T, B, H+F) f32
    T, B = sx.shape[0], sx.shape[1]
    s = sx[..., :H]                           # (T, B, H) f32 (feeds the f32 elementwise path)
    sx_mm = sx.astype(mm_dtype)

    # z / r from a single fused (H+F)-deep contraction: [S|x] @ [[Wzh|Wrh],[Wzx|Wrx]].
    gate_zr = jnp.einsum('tbi,tik->tbk', sx_mm, w_zr_ref[...],
                         preferred_element_type=jnp.float32) + b_zr_ref[...]
    z = jax.nn.sigmoid(gate_zr[..., :H])
    r = jax.nn.sigmoid(gate_zr[..., H:])

    # hHat from [r*S | x] @ [[Wth],[Wtx]] over the same (H+F)-deep contraction.
    rsx = jnp.concatenate([r * s, sx[..., H:]], axis=-1).astype(mm_dtype)
    hhat = jnp.tanh(jnp.einsum('tbi,tih->tbh', rsx, w_t_ref[...],
                               preferred_element_type=jnp.float32) + b_t_ref[...])

    h = s + z * (hhat - s)                    # == (1-z)*s + z*hHat   (f32)

    o = jax.nn.sigmoid(jnp.einsum('tbh,thf->tbf', h.astype(mm_dtype), w_o_ref[...],
                                  preferred_element_type=jnp.float32) + b_o_ref[...])

    # Store directly in the final (B, node, feat) block layouts.  Done with static slice
    # copies over the shorter axis (simple, guaranteed-supported ops) instead of a general
    # in-kernel transpose.
    if B <= T:
        for b in range(B):
            o_ref[b] = o[:, b, :].astype(o_ref.dtype)
            h_ref[b] = h[:, b, :].astype(h_ref.dtype)
    else:
        for t in range(T):
            o_ref[:, t, :] = o[t].astype(o_ref.dtype)
            h_ref[:, t, :] = h[t].astype(h_ref.dtype)


@functools.partial(jax.jit, static_argnames=("tile_nodes",))
def propogator_forward(x, hState, A, packed, *, tile_nodes):
    """x: [B,N,F], hState: [B,H,N], A: [B,N,N], packed from pack_params -> (O [B,N,F], H [B,H,N])."""
    B, N, F = x.shape
    H = hState.shape[1]
    T = int(tile_nodes)
    Np = packed.w_zr.shape[0]
    assert Np % T == 0 and Np >= N
    HF = H + F
    mm_dtype = packed.w_zr.dtype

    # Per-call activations: S = bmm(hState, A) on the MXU, emitted node-major and fused with x
    # into one slab sx = [S | x] : (N, B, H+F) f32 (single XLA pass; replaces the old separate
    # S / x transpose passes).
    s_nbh = jnp.einsum('bhk,bkn->nbh', hState.astype(jnp.float32), A.astype(jnp.float32))
    sx = jnp.concatenate([s_nbh, jnp.transpose(x, (1, 0, 2)).astype(jnp.float32)], axis=-1)
    if Np != N:
        sx = jnp.pad(sx, ((0, Np - N), (0, 0), (0, 0)))

    def nspec(*tail):
        return pl.BlockSpec((T,) + tail, lambda i: (i, 0, 0))

    kernel = functools.partial(_grnn_prop_kernel, dim_hidden=H, mm_dtype=mm_dtype)

    w_bytes = jnp.dtype(mm_dtype).itemsize
    flops = 2 * Np * B * (HF * 2 * H + HF * H + H * F)
    bytes_accessed = (sx.size * 4
                      + (packed.w_zr.size + packed.w_t.size + packed.w_o.size) * w_bytes
                      + (packed.b_zr.size + packed.b_t.size + packed.b_o.size) * 4
                      + Np * B * (F + H) * 4)
    cost = pl.CostEstimate(flops=int(flops),
                           transcendentals=int(Np * B * (3 * H + F)),
                           bytes_accessed=int(bytes_accessed))

    O_full, H_full = pl.pallas_call(
        kernel,
        grid_spec=pltpu.PrefetchScalarGridSpec(
            num_scalar_prefetch=0,
            grid=(Np // T,),
            in_specs=[
                nspec(B, HF),          # sx = [S | x]
                nspec(HF, 2 * H),      # [[Wzh|Wrh],[Wzx|Wrx]]
                nspec(1, 2 * H),       # [bz | br]
                nspec(HF, H),          # [[Wth],[Wtx]]
                nspec(1, H),           # bt
                nspec(H, F),           # Wo
                nspec(1, F),           # bo
            ],
            out_specs=[
                pl.BlockSpec((B, T, F), lambda i: (0, i, 0)),   # O in final layout
                pl.BlockSpec((B, T, H), lambda i: (0, i, 0)),   # H, node in middle axis
            ],
        ),
        out_shape=(
            jax.ShapeDtypeStruct((B, Np, F), jnp.float32),
            jax.ShapeDtypeStruct((B, Np, H), jnp.float32),
        ),
        compiler_params=pltpu.CompilerParams(
            dimension_semantics=("parallel",),            # node tiles are independent
            vmem_limit_bytes=48 * 1024 * 1024),           # raise v5e's 16 MiB default, < v7x physical
        cost_estimate=cost,
    )(sx, packed.w_zr, packed.b_zr, packed.w_t, packed.b_t, packed.w_o, packed.b_o)

    O = O_full[:, :N, :]                                  # (B, N, F) — no transpose pass
    Hout = jnp.swapaxes(H_full[:, :N, :], 1, 2)           # (B, H, N)
    return O, Hout


def init_params(key, N, F, H):
    """Per-node GRU cell weights (PyTorch nn.Linear-style uniform init)."""
    ks = jax.random.split(key, 11)
    k_in = 1.0 / float(jnp.sqrt(float(H + F)))   # Linear(H+F -> H)
    k_out = 1.0 / float(jnp.sqrt(float(H)))      # Linear(H -> F)

    def u(k, shape, bound):
        return jax.random.uniform(k, shape, jnp.float32, -bound, bound)

    wzh = u(ks[0], (N, H, H), k_in); wzx = u(ks[1], (N, F, H), k_in); bz = u(ks[2], (N, 1, H), k_in)
    wrh = u(ks[3], (N, H, H), k_in); wrx = u(ks[4], (N, F, H), k_in); br = u(ks[5], (N, 1, H), k_in)
    wth = u(ks[6], (N, H, H), k_in); wtx = u(ks[7], (N, F, H), k_in); bt = u(ks[8], (N, 1, H), k_in)
    wo = u(ks[9], (N, H, F), k_out); bo = u(ks[10], (N, 1, F), k_out)
    return (wzh, wzx, bz, wrh, wrx, br, wth, wtx, bt, wo, bo)


def reference_forward(x, hState, A, params):
    """Pure-JAX f32 reference mirroring the PyTorch loop."""
    B, N, F = x.shape
    (wzh, wzx, bz, wrh, wrx, br, wth, wtx, bt, wo, bo) = params
    S = jnp.einsum('bhk,bkn->bhn', hState, A)
    O_list, H_list = [], []
    for n in range(N):
        s = S[:, :, n]
        xn = x[:, n, :]
        z = jax.nn.sigmoid(s @ wzh[n] + xn @ wzx[n] + bz[n, 0])
        r = jax.nn.sigmoid(s @ wrh[n] + xn @ wrx[n] + br[n, 0])
        hhat = jnp.tanh((r * s) @ wth[n] + xn @ wtx[n] + bt[n, 0])
        h = (1.0 - z) * s + z * hhat
        o = jax.nn.sigmoid(h @ wo[n] + bo[n, 0])
        O_list.append(o)
        H_list.append(h)
    O = jnp.stack(O_list, axis=1)                   # (B, N, F)
    Hout = jnp.stack(H_list, axis=2)                # (B, H, N)
    return O, Hout


if __name__ == "__main__":
    B, N, F, H = 2, 4, 8, 32   # batchSize, nNode, dimFeature, dimHidden

    key = jax.random.PRNGKey(0)
    kx, kh, ka, kp = jax.random.split(key, 4)
    x = jax.random.normal(kx, (B, N, F), jnp.float32)
    hState = jax.random.normal(kh, (B, H, N), jnp.float32)
    A = jax.random.normal(ka, (B, N, N), jnp.float32)
    params = init_params(kp, N, F, H)

    O_ref, H_ref = reference_forward(x, hState, A, params)

    # f32 MXU operands: tight check against the pure-JAX reference.
    packed32, T32 = pack_params(params, batch_size=B, mm_dtype=jnp.float32)
    O32, H32 = propogator_forward(x, hState, A, packed32, tile_nodes=T32)
    jax.block_until_ready((O32, H32))
    assert O32.shape == (B, N, F) and H32.shape == (B, H, N)
    assert jnp.allclose(O32, O_ref, atol=5e-4, rtol=5e-4)
    assert jnp.allclose(H32, H_ref, atol=5e-4, rtol=5e-4)

    # bf16 MXU operands (default; recommended on v5e/v6e/v7x): loose check.
    packedbf, Tbf = pack_params(params, batch_size=B, mm_dtype=jnp.bfloat16)
    Obf, Hbf = propogator_forward(x, hState, A, packedbf, tile_nodes=Tbf)
    jax.block_until_ready((Obf, Hbf))
    assert Obf.shape == (B, N, F) and Hbf.shape == (B, H, N)
    assert jnp.allclose(Obf, O_ref, atol=5e-2, rtol=5e-2)
    assert jnp.allclose(Hbf, H_ref, atol=5e-2, rtol=5e-2)

    print("KERNEL_OK")
</pallas_src>

<mosaic_0001>
module attributes {stable_mosaic.version = 11 : i64} {
  func.func @_grnn_prop_kernel(%arg0: i32, %arg1: memref<8x2x40xf32, #tpu.memory_space<vmem>>, %arg2: memref<8x40x64xf32, #tpu.memory_space<vmem>>, %arg3: memref<8x1x64xf32, #tpu.memory_space<vmem>>, %arg4: memref<8x40x32xf32, #tpu.memory_space<vmem>>, %arg5: memref<8x1x32xf32, #tpu.memory_space<vmem>>, %arg6: memref<8x32x8xf32, #tpu.memory_space<vmem>>, %arg7: memref<8x1x8xf32, #tpu.memory_space<vmem>>, %arg8: memref<2x8x8xf32, #tpu.memory_space<vmem>>, %arg9: memref<2x8x32xf32, #tpu.memory_space<vmem>>) attributes {dimension_semantics = [#tpu.dimension_semantics<parallel>], iteration_bounds = array<i64: 1>, scalar_prefetch = 0 : i64, scratch_operands = 0 : i64, tpu.core_type = #tpu.core_type<tc>, window_params = [{transform_indices = @transform_0, window_bounds = array<i64: 8, 2, 40>}, {transform_indices = @transform_1, window_bounds = array<i64: 8, 40, 64>}, {transform_indices = @transform_2, window_bounds = array<i64: 8, 1, 64>}, {transform_indices = @transform_3, window_bounds = array<i64: 8, 40, 32>}, {transform_indices = @transform_4, window_bounds = array<i64: 8, 1, 32>}, {transform_indices = @transform_5, window_bounds = array<i64: 8, 32, 8>}, {transform_indices = @transform_6, window_bounds = array<i64: 8, 1, 8>}, {transform_indices = @transform_7, window_bounds = array<i64: 2, 8, 8>}, {transform_indices = @transform_8, window_bounds = array<i64: 2, 8, 32>}]} {
    %c0 = arith.constant 0 : index
    %c0_0 = arith.constant 0 : index
    %c0_1 = arith.constant 0 : index
    %0 = vector.load %arg1[%c0, %c0_0, %c0_1] : memref<8x2x40xf32, #tpu.memory_space<vmem>>, vector<8x2x40xf32>
    %1 = vector.extract_strided_slice %0 {offsets = [0, 0, 0], sizes = [8, 2, 32], strides = [1, 1, 1]} : vector<8x2x40xf32> to vector<8x2x32xf32>
    %c0_2 = arith.constant 0 : index
    %c0_3 = arith.constant 0 : index
    %c0_4 = arith.constant 0 : index
    %2 = vector.load %arg2[%c0_2, %c0_3, %c0_4] : memref<8x40x64xf32, #tpu.memory_space<vmem>>, vector<8x40x64xf32>
    "tpu.trace_start"() <{level = 10 : i32, message = "tbi,tik->tbk"}> : () -> ()
    %cst = arith.constant dense<0.000000e+00> : vector<8x2x64xf32>
    %3 = tpu.matmul %0, %2, %cst {dimension_numbers = #tpu.dot_dimension_numbers<[2], [1], [1], [2], [0, 0, 0, 1, 1, 2], [0], [0]>} : vector<8x2x40xf32>, vector<8x40x64xf32>, vector<8x2x64xf32> -> vector<8x2x64xf32>
    "tpu.trace_stop"() : () -> ()
    %c0_5 = arith.constant 0 : index
    %c0_6 = arith.constant 0 : index
    %c0_7 = arith.constant 0 : index
    %4 = vector.load %arg3[%c0_5, %c0_6, %c0_7] : memref<8x1x64xf32, #tpu.memory_space<vmem>>, vector<8x1x64xf32>
    %5 = vector.broadcast %4 : vector<8x1x64xf32> to vector<8x2x64xf32>
    %6 = arith.addf %3, %5 : vector<8x2x64xf32>
    %7 = vector.extract_strided_slice %6 {offsets = [0, 0, 0], sizes = [8, 2, 32], strides = [1, 1, 1]} : vector<8x2x64xf32> to vector<8x2x32xf32>
    %8 = arith.negf %7 : vector<8x2x32xf32>
    %9 = math.exp %8 : vector<8x2x32xf32>
    %cst_8 = arith.constant 1.000000e+00 : f32
    %10 = vector.broadcast %cst_8 : f32 to vector<8x2x32xf32>
    %11 = arith.addf %10, %9 : vector<8x2x32xf32>
    %12 = arith.divf %10, %11 : vector<8x2x32xf32>
    %13 = vector.extract_strided_slice %6 {offsets = [0, 0, 32], sizes = [8, 2, 32], strides = [1, 1, 1]} : vector<8x2x64xf32> to vector<8x2x32xf32>
    %14 = arith.negf %13 : vector<8x2x32xf32>
    %15 = math.exp %14 : vector<8x2x32xf32>
    %cst_9 = arith.constant 1.000000e+00 : f32
    %16 = vector.broadcast %cst_9 : f32 to vector<8x2x32xf32>
    %17 = arith.addf %16, %15 : vector<8x2x32xf32>
    %18 = arith.divf %16, %17 : vector<8x2x32xf32>
    %19 = arith.mulf %18, %1 : vector<8x2x32xf32>
    %20 = vector.extract_strided_slice %0 {offsets = [0, 0, 32], sizes = [8, 2, 8], strides = [1, 1, 1]} : vector<8x2x40xf32> to vector<8x2x8xf32>
    %21 = tpu.concatenate %19, %20 in 2 : vector<8x2x32xf32>, vector<8x2x8xf32> -> vector<8x2x40xf32>
    %c0_10 = arith.constant 0 : index
    %c0_11 = arith.constant 0 : index
    %c0_12 = arith.constant 0 : index
    %22 = vector.load %arg4[%c0_10, %c0_11, %c0_12] : memref<8x40x32xf32, #tpu.memory_space<vmem>>, vector<8x40x32xf32>
    "tpu.trace_start"() <{level = 10 : i32, message = "tbi,tih->tbh"}> : () -> ()
    %cst_13 = arith.constant dense<0.000000e+00> : vector<8x2x32xf32>
    %23 = tpu.matmul %21, %22, %cst_13 {dimension_numbers = #tpu.dot_dimension_numbers<[2], [1], [1], [2], [0, 0, 0, 1, 1, 2], [0], [0]>} : vector<8x2x40xf32>, vector<8x40x32xf32>, vector<8x2x32xf32> -> vector<8x2x32xf32>
    "tpu.trace_stop"() : () -> ()
    %c0_14 = arith.constant 0 : index
    %c0_15 = arith.constant 0 : index
    %c0_16 = arith.constant 0 : index
    %24 = vector.load %arg5[%c0_14, %c0_15, %c0_16] : memref<8x1x32xf32, #tpu.memory_space<vmem>>, vector<8x1x32xf32>
    %25 = vector.broadcast %24 : vector<8x1x32xf32> to vector<8x2x32xf32>
    %26 = arith.addf %23, %25 : vector<8x2x32xf32>
    %27 = math.tanh %26 : vector<8x2x32xf32>
    %28 = arith.subf %27, %1 : vector<8x2x32xf32>
    %29 = arith.mulf %12, %28 : vector<8x2x32xf32>
    %30 = arith.addf %1, %29 : vector<8x2x32xf32>
    %c0_17 = arith.constant 0 : index
    %c0_18 = arith.constant 0 : index
    %c0_19 = arith.constant 0 : index
    %31 = vector.load %arg6[%c0_17, %c0_18, %c0_19] : memref<8x32x8xf32, #tpu.memory_space<vmem>>, vector<8x32x8xf32>
    "tpu.trace_start"() <{level = 10 : i32, message = "tbh,thf->tbf"}> : () -> ()
    %cst_20 = arith.constant dense<0.000000e+00> : vector<8x2x8xf32>
    %32 = tpu.matmul %30, %31, %cst_20 {dimension_numbers = #tpu.dot_dimension_numbers<[2], [1], [1], [2], [0, 0, 0, 1, 1, 2], [0], [0]>} : vector<8x2x32xf32>, vector<8x32x8xf32>, vector<8x2x8xf32> -> vector<8x2x8xf32>
    "tpu.trace_stop"() : () -> ()
    %c0_21 = arith.constant 0 : index
    %c0_22 = arith.constant 0 : index
    %c0_23 = arith.constant 0 : index
    %33 = vector.load %arg7[%c0_21, %c0_22, %c0_23] : memref<8x1x8xf32, #tpu.memory_space<vmem>>, vector<8x1x8xf32>
    %34 = vector.broadcast %33 : vector<8x1x8xf32> to vector<8x2x8xf32>
    %35 = arith.addf %32, %34 : vector<8x2x8xf32>
    %36 = arith.negf %35 : vector<8x2x8xf32>
    %37 = math.exp %36 : vector<8x2x8xf32>
    %cst_24 = arith.constant 1.000000e+00 : f32
    %38 = vector.broadcast %cst_24 : f32 to vector<8x2x8xf32>
    %39 = arith.addf %38, %37 : vector<8x2x8xf32>
    %40 = arith.divf %38, %39 : vector<8x2x8xf32>
    %41 = vector.extract_strided_slice %40 {offsets = [0, 0, 0], sizes = [8, 1, 8], strides = [1, 1, 1]} : vector<8x2x8xf32> to vector<8x1x8xf32>
    %42 = vector.shape_cast %41 : vector<8x1x8xf32> to vector<8x8xf32>
    %c0_25 = arith.constant 0 : index
    %c0_26 = arith.constant 0 : index
    %c0_27 = arith.constant 0 : index
    %43 = vector.load %arg8[%c0_25, %c0_26, %c0_27] : memref<2x8x8xf32, #tpu.memory_space<vmem>>, vector<1x8x8xf32>
    %44 = vector.shape_cast %43 : vector<1x8x8xf32> to vector<8x8xf32>
    %45 = vector.shape_cast %42 : vector<8x8xf32> to vector<1x8x8xf32>
    tpu.vector_store %arg8[%c0_25, %c0_26, %c0_27], %45 {strides = array<i32>} : memref<2x8x8xf32, #tpu.memory_space<vmem>>, vector<1x8x8xf32>,
    %46 = vector.extract_strided_slice %30 {offsets = [0, 0, 0], sizes = [8, 1, 32], strides = [1, 1, 1]} : vector<8x2x32xf32> to vector<8x1x32xf32>
    %47 = vector.shape_cast %46 : vector<8x1x32xf32> to vector<8x32xf32>
    %c0_28 = arith.constant 0 : index
    %c0_29 = arith.constant 0 : index
    %c0_30 = arith.constant 0 : index
    %48 = vector.load %arg9[%c0_28, %c0_29, %c0_30] : memref<2x8x32xf32, #tpu.memory_space<vmem>>, vector<1x8x32xf32>
    %49 = vector.shape_cast %48 : vector<1x8x32xf32> to vector<8x32xf32>
    %50 = vector.shape_cast %47 : vector<8x32xf32> to vector<1x8x32xf32>
    tpu.vector_store %arg9[%c0_28, %c0_29, %c0_30], %50 {strides = array<i32>} : memref<2x8x32xf32, #tpu.memory_space<vmem>>, vector<1x8x32xf32>,
    %51 = vector.extract_strided_slice %40 {offsets = [0, 1, 0], sizes = [8, 1, 8], strides = [1, 1, 1]} : vector<8x2x8xf32> to vector<8x1x8xf32>
    %52 = vector.shape_cast %51 : vector<8x1x8xf32> to vector<8x8xf32>
    %c1 = arith.constant 1 : index
    %c0_31 = arith.constant 0 : index
    %c0_32 = arith.constant 0 : index
    %53 = vector.load %arg8[%c1, %c0_31, %c0_32] : memref<2x8x8xf32, #tpu.memory_space<vmem>>, vector<1x8x8xf32>
    %54 = vector.shape_cast %53 : vector<1x8x8xf32> to vector<8x8xf32>
    %55 = vector.shape_cast %52 : vector<8x8xf32> to vector<1x8x8xf32>
    tpu.vector_store %arg8[%c1, %c0_31, %c0_32], %55 {strides = array<i32>} : memref<2x8x8xf32, #tpu.memory_space<vmem>>, vector<1x8x8xf32>,
    %56 = vector.extract_strided_slice %30 {offsets = [0, 1, 0], sizes = [8, 1, 32], strides = [1, 1, 1]} : vector<8x2x32xf32> to vector<8x1x32xf32>
    %57 = vector.shape_cast %56 : vector<8x1x32xf32> to vector<8x32xf32>
    %c1_33 = arith.constant 1 : index
    %c0_34 = arith.constant 0 : index
    %c0_35 = arith.constant 0 : index
    %58 = vector.load %arg9[%c1_33, %c0_34, %c0_35] : memref<2x8x32xf32, #tpu.memory_space<vmem>>, vector<1x8x32xf32>
    %59 = vector.shape_cast %58 : vector<1x8x32xf32> to vector<8x32xf32>
    %60 = vector.shape_cast %57 : vector<8x32xf32> to vector<1x8x32xf32>
    tpu.vector_store %arg9[%c1_33, %c0_34, %c0_35], %60 {strides = array<i32>} : memref<2x8x32xf32, #tpu.memory_space<vmem>>, vector<1x8x32xf32>,
    return
  }
  func.func @transform_0(%arg0: i32) -> (i32, i32, i32) {
    %c0_i32 = arith.constant 0 : i32
    %c0_i32_0 = arith.constant 0 : i32
    %c0_i32_1 = arith.constant 0 : i32
    return %arg0, %c0_i32, %c0_i32_0 : i32, i32, i32
  }
  func.func @transform_1(%arg0: i32) -> (i32, i32, i32) {
    %c0_i32 = arith.constant 0 : i32
    %c0_i32_0 = arith.constant 0 : i32
    %c0_i32_1 = arith.constant 0 : i32
    return %arg0, %c0_i32, %c0_i32_0 : i32, i32, i32
  }
  func.func @transform_2(%arg0: i32) -> (i32, i32, i32) {
    %c0_i32 = arith.constant 0 : i32
    %c0_i32_0 = arith.constant 0 : i32
    %c0_i32_1 = arith.constant 0 : i32
    return %arg0, %c0_i32, %c0_i32_0 : i32, i32, i32
  }
  func.func @transform_3(%arg0: i32) -> (i32, i32, i32) {
    %c0_i32 = arith.constant 0 : i32
    %c0_i32_0 = arith.constant 0 : i32
    %c0_i32_1 = arith.constant 0 : i32
    return %arg0, %c0_i32, %c0_i32_0 : i32, i32, i32
  }
  func.func @transform_4(%arg0: i32) -> (i32, i32, i32) {
    %c0_i32 = arith.constant 0 : i32
    %c0_i32_0 = arith.constant 0 : i32
    %c0_i32_1 = arith.constant 0 : i32
    return %arg0, %c0_i32, %c0_i32_0 : i32, i32, i32
  }
  func.func @transform_5(%arg0: i32) -> (i32, i32, i32) {
    %c0_i32 = arith.constant 0 : i32
    %c0_i32_0 = arith.constant 0 : i32
    %c0_i32_1 = arith.constant 0 : i32
    return %arg0, %c0_i32, %c0_i32_0 : i32, i32, i32
  }
  func.func @transform_6(%arg0: i32) -> (i32, i32, i32) {
    %c0_i32 = arith.constant 0 : i32
    %c0_i32_0 = arith.constant 0 : i32
    %c0_i32_1 = arith.constant 0 : i32
    return %arg0, %c0_i32, %c0_i32_0 : i32, i32, i32
  }
  func.func @transform_7(%arg0: i32) -> (i32, i32, i32) {
    %c0_i32 = arith.constant 0 : i32
    %c0_i32_0 = arith.constant 0 : i32
    %c0_i32_1 = arith.constant 0 : i32
    return %c0_i32, %arg0, %c0_i32_0 : i32, i32, i32
  }
  func.func @transform_8(%arg0: i32) -> (i32, i32, i32) {
    %c0_i32 = arith.constant 0 : i32
    %c0_i32_0 = arith.constant 0 : i32
    %c0_i32_1 = arith.constant 0 : i32
    return %c0_i32, %arg0, %c0_i32_0 : i32, i32, i32
  }
}

</mosaic_0001>

<llo_original>
// kernel: propogator_forward.1
$region0: #{propogator_forward.1}
  #allocation0 [shape = 'u32[]', space=smem, size = 0x4, offset = 0x4, fixed_abs, tag = 'smem constant byte address 0x4 - core index']
  #allocation1 [shape = 'u32[72,128]{1,0:T(1,128)}', space=vmem, size = 0x9000, scoped, tag = 'internal scratch']
  %s0 = inlined_call_operand.vmem [shape: f32[8,2,40], index: 0, kind: input, shape index: {}]
  %s1 = inlined_call_operand.vmem [shape: f32[8,40,64], index: 1, kind: input, shape index: {}]
  %s2 = inlined_call_operand.vmem [shape: f32[8,1,64], index: 2, kind: input, shape index: {}]
  %s3 = inlined_call_operand.vmem [shape: f32[8,40,32], index: 3, kind: input, shape index: {}]
  %s4 = inlined_call_operand.vmem [shape: f32[8,1,32], index: 4, kind: input, shape index: {}]
  %s5 = inlined_call_operand.vmem [shape: f32[8,32,8], index: 5, kind: input, shape index: {}]
  %s6 = inlined_call_operand.vmem [shape: f32[8,1,8], index: 6, kind: input, shape index: {}]
  %s7 = inlined_call_operand.vmem [shape: f32[2,8,8], index: 7, kind: output, shape index: {0}]
  %s8 = inlined_call_operand.vmem [shape: f32[2,8,32], index: 8, kind: output, shape index: {1}]
  %9 = xla_tuple %s7, %s8
  %s10 = sld [smem:[#allocation0]]
  $region46: #{propogator_forward.1} parent=0
    _
  %s12 = ssub.s32 1, %s10
  %s13 = scalar_select 0, %s12, %s10
  // Predicated region
  $region2: #{propogator_forward.1} parent=0 // pred_check
    _
  $region3: #{propogator_forward.1} parent=0 // pred_check_branch
    %15 = sbr.rel (0) target = $region5
  $region4: #{propogator_forward.1} parent=0 // pred_region
    _
  $region5: #{propogator_forward.1} parent=0 // pred_fallthru
    _
  // Predicated region
  $region6: #{propogator_forward.1} parent=0 // pred_check
    _
  $region7: #{propogator_forward.1} parent=0 // pred_check_branch
    %17 = sbr.rel (0) target = $region9
  $region8: #{propogator_forward.1} parent=0 // pred_region
    _
  $region9: #{propogator_forward.1} parent=0 // pred_fallthru
    _
  // Predicated region
  $region10: #{propogator_forward.1} parent=0 // pred_check
    _
  $region11: #{propogator_forward.1} parent=0 // pred_check_branch
    %19 = sbr.rel (0) target = $region13
  $region12: #{propogator_forward.1} parent=0 // pred_region
    _
  $region13: #{propogator_forward.1} parent=0 // pred_fallthru
    _
  // Predicated region
  $region14: #{propogator_forward.1} parent=0 // pred_check
    _
  $region15: #{propogator_forward.1} parent=0 // pred_check_branch
    %21 = sbr.rel (0) target = $region17
  $region16: #{propogator_forward.1} parent=0 // pred_region
    _
  $region17: #{propogator_forward.1} parent=0 // pred_fallthru
    _
  // Predicated region
  $region18: #{propogator_forward.1} parent=0 // pred_check
    _
  $region19: #{propogator_forward.1} parent=0 // pred_check_branch
    %23 = sbr.rel (0) target = $region21
  $region20: #{propogator_forward.1} parent=0 // pred_region
    _
  $region21: #{propogator_forward.1} parent=0 // pred_fallthru
    _
  // Predicated region
  $region22: #{propogator_forward.1} parent=0 // pred_check
    _
  $region23: #{propogator_forward.1} parent=0 // pred_check_branch
    %25 = sbr.rel (0) target = $region25
  $region24: #{propogator_forward.1} parent=0 // pred_region
    _
  $region25: #{propogator_forward.1} parent=0 // pred_fallthru
    _
  // Predicated region
  $region26: #{propogator_forward.1} parent=0 // pred_check
    _
  $region27: #{propogator_forward.1} parent=0 // pred_check_branch
    %27 = sbr.rel (0) target = $region29
  $region28: #{propogator_forward.1} parent=0 // pred_region
    _
  $region29: #{propogator_forward.1} parent=0 // pred_fallthru
    _
  %v28 = vld [vmem:[%s0] sm:$0x3]
  %v29 = vld [vmem:[%s0 + $0x2] sm:$0x3]
  %v30 = vld [vmem:[%s0 + $0x4] sm:$0x3]
  %v31 = vld [vmem:[%s0 + $0x6] sm:$0x3]
  %v32 = vld [vmem:[%s0 + $0x8] sm:$0x3]
  %v33 = vld [vmem:[%s0 + $0xa] sm:$0x3]
  %v34 = vld [vmem:[%s0 + $0xc] sm:$0x3]
  %v35 = vld [vmem:[%s0 + $0xe] sm:$0x3]
  %v36 = vld [vmem:[%s1] sm:$0xff]
  %v37 = vld [vmem:[%s1 + $0x8] sm:$0xff]
  %v38 = vld [vmem:[%s1 + $0x10] sm:$0xff]
  %v39 = vld [vmem:[%s1 + $0x18] sm:$0xff]
  %v40 = vld [vmem:[%s1 + $0x20] sm:$0xff]
  %v41 = vld [vmem:[%s1 + $0x28] sm:$0xff]
  %v42 = vld [vmem:[%s1 + $0x30] sm:$0xff]
  %v43 = vld [vmem:[%s1 + $0x38] sm:$0xff]
  %v44 = vld [vmem:[%s1 + $0x40] sm:$0xff]
  %v45 = vld [vmem:[%s1 + $0x48] sm:$0xff]
  %v46 = vld [vmem:[%s1 + $0x50] sm:$0xff]
  %v47 = vld [vmem:[%s1 + $0x58] sm:$0xff]
  %v48 = vld [vmem:[%s1 + $0x60] sm:$0xff]
  %v49 = vld [vmem:[%s1 + $0x68] sm:$0xff]
  %v50 = vld [vmem:[%s1 + $0x70] sm:$0xff]
  %v51 = vld [vmem:[%s1 + $0x78] sm:$0xff]
  %v52 = vld [vmem:[%s1 + $0x80] sm:$0xff]
  %v53 = vld [vmem:[%s1 + $0x88] sm:$0xff]
  %v54 = vld [vmem:[%s1 + $0x90] sm:$0xff]
  %v55 = vld [vmem:[%s1 + $0x98] sm:$0xff]
  %v56 = vld [vmem:[%s1 + $0xa0] sm:$0xff]
  %v57 = vld [vmem:[%s1 + $0xa8] sm:$0xff]
  %v58 = vld [vmem:[%s1 + $0xb0] sm:$0xff]
  %v59 = vld [vmem:[%s1 + $0xb8] sm:$0xff]
  %v60 = vld [vmem:[%s1 + $0xc0] sm:$0xff]
  %v61 = vld [vmem:[%s1 + $0xc8] sm:$0xff]
  %v62 = vld [vmem:[%s1 + $0xd0] sm:$0xff]
  %v63 = vld [vmem:[%s1 + $0xd8] sm:$0xff]
  %v64 = vld [vmem:[%s1 + $0xe0] sm:$0xff]
  %v65 = vld [vmem:[%s1 + $0xe8] sm:$0xff]
  %v66 = vld [vmem:[%s1 + $0xf0] sm:$0xff]
  %v67 = vld [vmem:[%s1 + $0xf8] sm:$0xff]
  %v68 = vld [vmem:[%s1 + $0x100] sm:$0xff]
  %v69 = vld [vmem:[%s1 + $0x108] sm:$0xff]
  %v70 = vld [vmem:[%s1 + $0x110] sm:$0xff]
  %v71 = vld [vmem:[%s1 + $0x118] sm:$0xff]
  %v72 = vld [vmem:[%s1 + $0x120] sm:$0xff]
  %v73 = vld [vmem:[%s1 + $0x128] sm:$0xff]
  %v74 = vld [vmem:[%s1 + $0x130] sm:$0xff]
  %v75 = vld [vmem:[%s1 + $0x138] sm:$0xff]
  %v76 = vld [vmem:[%s2] sm:$0x1]
  %v77 = vld [vmem:[%s2 + $0x1] sm:$0x1]
  %v78 = vld [vmem:[%s2 + $0x2] sm:$0x1]
  %v79 = vld [vmem:[%s2 + $0x3] sm:$0x1]
  %v80 = vld [vmem:[%s2 + $0x4] sm:$0x1]
  %v81 = vld [vmem:[%s2 + $0x5] sm:$0x1]
  %v82 = vld [vmem:[%s2 + $0x6] sm:$0x1]
  %v83 = vld [vmem:[%s2 + $0x7] sm:$0x1]
  %v92 = vperm.slane %v76, 0
  %v93 = vperm.slane %v77, 0
  %v94 = vperm.slane %v78, 0
  %v95 = vperm.slane %v79, 0
  %v96 = vperm.slane %v80, 0
  %v97 = vperm.slane %v81, 0
  %v98 = vperm.slane %v82, 0
  %v99 = vperm.slane %v83, 0
  %vm108 = vcmask 326656
  %v110 = vsel %vm108, %v28, 0
  %112 = vmatpush.msra.mxu0 0.0
  %113 = vmatpush.msra.mxu0 0.0
  %114 = vmatpush.msra.mxu0 0.0
  %115 = vmatpush.msra.mxu0 0.0
  %116 = vmatpush.msra.mxu0 0.0
  %117 = vmatpush.msra.mxu0 0.0
  %118 = vmatpush.msra.mxu0 0.0
  %119 = vmatpush.msra.mxu0 0.0
  %120 = vmatpush.msra.mxu0 0.0
  %121 = vmatpush.msra.mxu0 0.0
  %122 = vmatpush.msra.mxu0 0.0
  %123 = vmatpush.msra.mxu0 %v40
  %124 = vmatpush.msra.mxu0 %v39
  %125 = vmatpush.msra.mxu0 %v38
  %126 = vmatpush.msra.mxu0 %v37
  %127 = vmatpush.msra.mxu0 %v36
  %128 = vmatmul.f32.gmra.mxu0 %v110
  %v129 = vpop.f32.mrf.mxu0
  %v130 = vadd.f32 %v92, %v129
  %131 = vdwg.mxu0
  %v133 = vsel %vm108, %v29, 0
  %135 = vmatpush.msra.mxu0 0.0
  %136 = vmatpush.msra.mxu0 0.0
  %137 = vmatpush.msra.mxu0 0.0
  %138 = vmatpush.msra.mxu0 0.0
  %139 = vmatpush.msra.mxu0 0.0
  %140 = vmatpush.msra.mxu0 0.0
  %141 = vmatpush.msra.mxu0 0.0
  %142 = vmatpush.msra.mxu0 0.0
  %143 = vmatpush.msra.mxu0 0.0
  %144 = vmatpush.msra.mxu0 0.0
  %145 = vmatpush.msra.mxu0 0.0
  %146 = vmatpush.msra.mxu0 %v45
  %147 = vmatpush.msra.mxu0 %v44
  %148 = vmatpush.msra.mxu0 %v43
  %149 = vmatpush.msra.mxu0 %v42
  %150 = vmatpush.msra.mxu0 %v41
  %151 = vmatmul.f32.gmra.mxu0 %v133
  %v152 = vpop.f32.mrf.mxu0
  %v153 = vadd.f32 %v93, %v152
  %154 = vdwg.mxu0
  %v156 = vsel %vm108, %v30, 0
  %158 = vmatpush.msra.mxu0 0.0
  %159 = vmatpush.msra.mxu0 0.0
  %160 = vmatpush.msra.mxu0 0.0
  %161 = vmatpush.msra.mxu0 0.0
  %162 = vmatpush.msra.mxu0 0.0
  %163 = vmatpush.msra.mxu0 0.0
  %164 = vmatpush.msra.mxu0 0.0
  %165 = vmatpush.msra.mxu0 0.0
  %166 = vmatpush.msra.mxu0 0.0
  %167 = vmatpush.msra.mxu0 0.0
  %168 = vmatpush.msra.mxu0 0.0
  %169 = vmatpush.msra.mxu0 %v50
  %170 = vmatpush.msra.mxu0 %v49
  %171 = vmatpush.msra.mxu0 %v48
  %172 = vmatpush.msra.mxu0 %v47
  %173 = vmatpush.msra.mxu0 %v46
  %174 = vmatmul.f32.gmra.mxu0 %v156
  %v175 = vpop.f32.mrf.mxu0
  %v176 = vadd.f32 %v94, %v175
  %177 = vdwg.mxu0
  %v179 = vsel %vm108, %v31, 0
  %181 = vmatpush.msra.mxu0 0.0
  %182 = vmatpush.msra.mxu0 0.0
  %183 = vmatpush.msra.mxu0 0.0
  %184 = vmatpush.msra.mxu0 0.0
  %185 = vmatpush.msra.mxu0 0.0
  %186 = vmatpush.msra.mxu0 0.0
  %187 = vmatpush.msra.mxu0 0.0
  %188 = vmatpush.msra.mxu0 0.0
  %189 = vmatpush.msra.mxu0 0.0
  %190 = vmatpush.msra.mxu0 0.0
  %191 = vmatpush.msra.mxu0 0.0
  %192 = vmatpush.msra.mxu0 %v55
  %193 = vmatpush.msra.mxu0 %v54
  %194 = vmatpush.msra.mxu0 %v53
  %195 = vmatpush.msra.mxu0 %v52
  %196 = vmatpush.msra.mxu0 %v51
  %197 = vmatmul.f32.gmra.mxu0 %v179
  %v198 = vpop.f32.mrf.mxu0
  %v199 = vadd.f32 %v95, %v198
  %200 = vdwg.mxu0
  %v202 = vsel %vm108, %v32, 0
  %204 = vmatpush.msra.mxu0 0.0
  %205 = vmatpush.msra.mxu0 0.0
  %206 = vmatpush.msra.mxu0 0.0
  %207 = vmatpush.msra.mxu0 0.0
  %208 = vmatpush.msra.mxu0 0.0
  %209 = vmatpush.msra.mxu0 0.0
  %210 = vmatpush.msra.mxu0 0.0
  %211 = vmatpush.msra.mxu0 0.0
  %212 = vmatpush.msra.mxu0 0.0
  %213 = vmatpush.msra.mxu0 0.0
  %214 = vmatpush.msra.mxu0 0.0
  %215 = vmatpush.msra.mxu0 %v60
  %216 = vmatpush.msra.mxu0 %v59
  %217 = vmatpush.msra.mxu0 %v58
  %218 = vmatpush.msra.mxu0 %v57
  %219 = vmatpush.msra.mxu0 %v56
  %220 = vmatmul.f32.gmra.mxu0 %v202
  %v221 = vpop.f32.mrf.mxu0
  %v222 = vadd.f32 %v96, %v221
  %223 = vdwg.mxu0
  %v225 = vsel %vm108, %v33, 0
  %227 = vmatpush.msra.mxu0 0.0
  %228 = vmatpush.msra.mxu0 0.0
  %229 = vmatpush.msra.mxu0 0.0
  %230 = vmatpush.msra.mxu0 0.0
  %231 = vmatpush.msra.mxu0 0.0
  %232 = vmatpush.msra.mxu0 0.0
  %233 = vmatpush.msra.mxu0 0.0
  %234 = vmatpush.msra.mxu0 0.0
  %235 = vmatpush.msra.mxu0 0.0
  %236 = vmatpush.msra.mxu0 0.0
  %237 = vmatpush.msra.mxu0 0.0
  %238 = vmatpush.msra.mxu0 %v65
  %239 = vmatpush.msra.mxu0 %v64
  %240 = vmatpush.msra.mxu0 %v63
  %241 = vmatpush.msra.mxu0 %v62
  %242 = vmatpush.msra.mxu0 %v61
  %243 = vmatmul.f32.gmra.mxu0 %v225
  %v244 = vpop.f32.mrf.mxu0
  %v245 = vadd.f32 %v97, %v244
  %246 = vdwg.mxu0
  %v248 = vsel %vm108, %v34, 0
  %250 = vmatpush.msra.mxu0 0.0
  %251 = vmatpush.msra.mxu0 0.0
  %252 = vmatpush.msra.mxu0 0.0
  %253 = vmatpush.msra.mxu0 0.0
  %254 = vmatpush.msra.mxu0 0.0
  %255 = vmatpush.msra.mxu0 0.0
  %256 = vmatpush.msra.mxu0 0.0
  %257 = vmatpush.msra.mxu0 0.0
  %258 = vmatpush.msra.mxu0 0.0
  %259 = vmatpush.msra.mxu0 0.0
  %260 = vmatpush.msra.mxu0 0.0
  %261 = vmatpush.msra.mxu0 %v70
  %262 = vmatpush.msra.mxu0 %v69
  %263 = vmatpush.msra.mxu0 %v68
  %264 = vmatpush.msra.mxu0 %v67
  %265 = vmatpush.msra.mxu0 %v66
  %266 = vmatmul.f32.gmra.mxu0 %v248
  %v267 = vpop.f32.mrf.mxu0
  %v268 = vadd.f32 %v98, %v267
  %269 = vdwg.mxu0
  %v271 = vsel %vm108, %v35, 0
  %273 = vmatpush.msra.mxu0 0.0
  %274 = vmatpush.msra.mxu0 0.0
  %275 = vmatpush.msra.mxu0 0.0
  %276 = vmatpush.msra.mxu0 0.0
  %277 = vmatpush.msra.mxu0 0.0
  %278 = vmatpush.msra.mxu0 0.0
  %279 = vmatpush.msra.mxu0 0.0
  %280 = vmatpush.msra.mxu0 0.0
  %281 = vmatpush.msra.mxu0 0.0
  %282 = vmatpush.msra.mxu0 0.0
  %283 = vmatpush.msra.mxu0 0.0
  %284 = vmatpush.msra.mxu0 %v75
  %285 = vmatpush.msra.mxu0 %v74
  %286 = vmatpush.msra.mxu0 %v73
  %287 = vmatpush.msra.mxu0 %v72
  %288 = vmatpush.msra.mxu0 %v71
  %289 = vmatmul.f32.gmra.mxu0 %v271
  %v290 = vpop.f32.mrf.mxu0
  %v291 = vadd.f32 %v99, %v290
  %292 = vdwg.mxu0
  %v293 = vxor.u32 %v130, 2147483648
  %v294 = vxor.u32 %v153, 2147483648
  %v295 = vxor.u32 %v176, 2147483648
  %v296 = vxor.u32 %v199, 2147483648
  %v297 = vxor.u32 %v222, 2147483648
  %v298 = vxor.u32 %v245, 2147483648
  %v299 = vxor.u32 %v268, 2147483648
  %v300 = vxor.u32 %v291, 2147483648
  %v301 = vmul.f32 %v293, 1.442695
  %v302 = vpow.pop %v301
  %v303 = vmul.f32 %v294, 1.442695
  %v304 = vpow.pop %v303
  %v305 = vmul.f32 %v295, 1.442695
  %v306 = vpow.pop %v305
  %v307 = vmul.f32 %v296, 1.442695
  %v308 = vpow.pop %v307
  %v309 = vmul.f32 %v297, 1.442695
  %v310 = vpow.pop %v309
  %v311 = vmul.f32 %v298, 1.442695
  %v312 = vpow.pop %v311
  %v313 = vmul.f32 %v299, 1.442695
  %v314 = vpow.pop %v313
  %v315 = vmul.f32 %v300, 1.442695
  %v316 = vpow.pop %v315
  %v317 = vadd.f32 %v302, 1.0
  %v318 = vadd.f32 %v304, 1.0
  %v319 = vadd.f32 %v306, 1.0
  %v320 = vadd.f32 %v308, 1.0
  %v321 = vadd.f32 %v310, 1.0
  %v322 = vadd.f32 %v312, 1.0
  %v323 = vadd.f32 %v314, 1.0
  %v324 = vadd.f32 %v316, 1.0
  %v325 = vrcp.pop %v317
  %v326 = vmul.f32 %v317, %v325
  %v327 = vsub.f32 1.0, %v326
  %v328 = vmul.f32 %v325, %v327
  %v329 = vadd.f32 %v325, %v328
  %vm330 = vweird.f32 %v317
  %vm331 = vweird.f32 %v325
  %vm332 = vmor %vm330, %vm331
  %v333 = vsel %vm332, %v325, %v329
  %v334 = vand.u32 2147483647, %v317
  %vm335 = vcmp.eq.f32.partialorder %v334, 8.507059e+37
  %v336 = vand.u32 %v317, 2147483648
  %v337 = vor.u32 1.1754944e-38, %v336
  %v338 = vsel %vm335, %v337, %v333
  %v339 = vmul.f32 1.0, %v338
  %v340 = vrcp.pop %v318
  %v341 = vmul.f32 %v318, %v340
  %v342 = vsub.f32 1.0, %v341
  %v343 = vmul.f32 %v340, %v342
  %v344 = vadd.f32 %v340, %v343
  %vm345 = vweird.f32 %v318
  %vm346 = vweird.f32 %v340
  %vm347 = vmor %vm345, %vm346
  %v348 = vsel %vm347, %v340, %v344
  %v349 = vand.u32 2147483647, %v318
  %vm350 = vcmp.eq.f32.partialorder %v349, 8.507059e+37
  %v351 = vand.u32 %v318, 2147483648
  %v352 = vor.u32 1.1754944e-38, %v351
  %v353 = vsel %vm350, %v352, %v348
  %v354 = vmul.f32 1.0, %v353
  %v355 = vrcp.pop %v319
  %v356 = vmul.f32 %v319, %v355
  %v357 = vsub.f32 1.0, %v356
  %v358 = vmul.f32 %v355, %v357
  %v359 = vadd.f32 %v355, %v358
  %vm360 = vweird.f32 %v319
  %vm361 = vweird.f32 %v355
  %vm362 = vmor %vm360, %vm361
  %v363 = vsel %vm362, %v355, %v359
  %v364 = vand.u32 2147483647, %v319
  %vm365 = vcmp.eq.f32.partialorder %v364, 8.507059e+37
  %v366 = vand.u32 %v319, 2147483648
  %v367 = vor.u32 1.1754944e-38, %v366
  %v368 = vsel %vm365, %v367, %v363
  %v369 = vmul.f32 1.0, %v368
  %v370 = vrcp.pop %v320
  %v371 = vmul.f32 %v320, %v370
  %v372 = vsub.f32 1.0, %v371
  %v373 = vmul.f32 %v370, %v372
  %v374 = vadd.f32 %v370, %v373
  %vm375 = vweird.f32 %v320
  %vm376 = vweird.f32 %v370
  %vm377 = vmor %vm375, %vm376
  %v378 = vsel %vm377, %v370, %v374
  %v379 = vand.u32 2147483647, %v320
  %vm380 = vcmp.eq.f32.partialorder %v379, 8.507059e+37
  %v381 = vand.u32 %v320, 2147483648
  %v382 = vor.u32 1.1754944e-38, %v381
  %v383 = vsel %vm380, %v382, %v378
  %v384 = vmul.f32 1.0, %v383
  %v385 = vrcp.pop %v321
  %v386 = vmul.f32 %v321, %v385
  %v387 = vsub.f32 1.0, %v386
  %v388 = vmul.f32 %v385, %v387
  %v389 = vadd.f32 %v385, %v388
  %vm390 = vweird.f32 %v321
  %vm391 = vweird.f32 %v385
  %vm392 = vmor %vm390, %vm391
  %v393 = vsel %vm392, %v385, %v389
  %v394 = vand.u32 2147483647, %v321
  %vm395 = vcmp.eq.f32.partialorder %v394, 8.507059e+37
  %v396 = vand.u32 %v321, 2147483648
  %v397 = vor.u32 1.1754944e-38, %v396
  %v398 = vsel %vm395, %v397, %v393
  %v399 = vmul.f32 1.0, %v398
  %v400 = vrcp.pop %v322
  %v401 = vmul.f32 %v322, %v400
  %v402 = vsub.f32 1.0, %v401
  %v403 = vmul.f32 %v400, %v402
  %v404 = vadd.f32 %v400, %v403
  %vm405 = vweird.f32 %v322
  %vm406 = vweird.f32 %v400
  %vm407 = vmor %vm405, %vm406
  %v408 = vsel %vm407, %v400, %v404
  %v409 = vand.u32 2147483647, %v322
  %vm410 = vcmp.eq.f32.partialorder %v409, 8.507059e+37
  %v411 = vand.u32 %v322, 2147483648
  %v412 = vor.u32 1.1754944e-38, %v411
  %v413 = vsel %vm410, %v412, %v408
  %v414 = vmul.f32 1.0, %v413
  %v415 = vrcp.pop %v323
  %v416 = vmul.f32 %v323, %v415
  %v417 = vsub.f32 1.0, %v416
  %v418 = vmul.f32 %v415, %v417
  %v419 = vadd.f32 %v415, %v418
  %vm420 = vweird.f32 %v323
  %vm421 = vweird.f32 %v415
  %vm422 = vmor %vm420, %vm421
  %v423 = vsel %vm422, %v415, %v419
  %v424 = vand.u32 2147483647, %v323
  %vm425 = vcmp.eq.f32.partialorder %v424, 8.507059e+37
  %v426 = vand.u32 %v323, 2147483648
  %v427 = vor.u32 1.1754944e-38, %v426
  %v428 = vsel %vm425, %v427, %v423
  %v429 = vmul.f32 1.0, %v428
  %v430 = vrcp.pop %v324
  %v431 = vmul.f32 %v324, %v430
  %v432 = vsub.f32 1.0, %v431
  %v433 = vmul.f32 %v430, %v432
  %v434 = vadd.f32 %v430, %v433
  %vm435 = vweird.f32 %v324
  %vm436 = vweird.f32 %v430
  %vm437 = vmor %vm435, %vm436
  %v438 = vsel %vm437, %v430, %v434
  %v439 = vand.u32 2147483647, %v324
  %vm440 = vcmp.eq.f32.partialorder %v439, 8.507059e+37
  %v441 = vand.u32 %v324, 2147483648
  %v442 = vor.u32 1.1754944e-38, %v441
  %v443 = vsel %vm440, %v442, %v438
  %v444 = vmul.f32 1.0, %v443
  %445 = vrot.lane.b32.xlu0 %v28, 32
  %v446 = vpop.permute.xlu0 %445
  %447 = vrot.lane.b32.xlu0 %v29, 32
  %v448 = vpop.permute.xlu0 %447
  %449 = vrot.lane.b32.xlu0 %v30, 32
  %v450 = vpop.permute.xlu0 %449
  %451 = vrot.lane.b32.xlu0 %v31, 32
  %v452 = vpop.permute.xlu0 %451
  %453 = vrot.lane.b32.xlu0 %v32, 32
  %v454 = vpop.permute.xlu0 %453
  %455 = vrot.lane.b32.xlu0 %v33, 32
  %v456 = vpop.permute.xlu0 %455
  %457 = vrot.lane.b32.xlu0 %v34, 32
  %v458 = vpop.permute.xlu0 %457
  %459 = vrot.lane.b32.xlu0 %v35, 32
  %v460 = vpop.permute.xlu0 %459
  %v469 = vmul.f32 %v339, %v446
  %v470 = vmul.f32 %v354, %v448
  %v471 = vmul.f32 %v369, %v450
  %v472 = vmul.f32 %v384, %v452
  %v473 = vmul.f32 %v399, %v454
  %v474 = vmul.f32 %v414, %v456
  %v475 = vmul.f32 %v429, %v458
  %v476 = vmul.f32 %v444, %v460
  %485 = vrot.lane.b32.xlu0 %v469, 96
  %v486 = vpop.permute.xlu0 %485
  %487 = vrot.lane.b32.xlu0 %v470, 96
  %v488 = vpop.permute.xlu0 %487
  %489 = vrot.lane.b32.xlu0 %v471, 96
  %v490 = vpop.permute.xlu0 %489
  %491 = vrot.lane.b32.xlu0 %v472, 96
  %v492 = vpop.permute.xlu0 %491
  %493 = vrot.lane.b32.xlu0 %v473, 96
  %v494 = vpop.permute.xlu0 %493
  %495 = vrot.lane.b32.xlu0 %v474, 96
  %v496 = vpop.permute.xlu0 %495
  %497 = vrot.lane.b32.xlu0 %v475, 96
  %v498 = vpop.permute.xlu0 %497
  %499 = vrot.lane.b32.xlu0 %v476, 96
  %v500 = vpop.permute.xlu0 %499
  %vm509 = vcmask 261120
  %v510 = vsel %vm509, %v486, %v28
  %v511 = vsel %vm509, %v488, %v29
  %v512 = vsel %vm509, %v490, %v30
  %v513 = vsel %vm509, %v492, %v31
  %v514 = vsel %vm509, %v494, %v32
  %v515 = vsel %vm509, %v496, %v33
  %v516 = vsel %vm509, %v498, %v34
  %v517 = vsel %vm509, %v500, %v35
  %v518 = vld [vmem:[%s3] sm:$0xff]
  %v519 = vld [vmem:[%s3 + $0x8] sm:$0xff]
  %v520 = vld [vmem:[%s3 + $0x10] sm:$0xff]
  %v521 = vld [vmem:[%s3 + $0x18] sm:$0xff]
  %v522 = vld [vmem:[%s3 + $0x20] sm:$0xff]
  %v523 = vld [vmem:[%s3 + $0x28] sm:$0xff]
  %v524 = vld [vmem:[%s3 + $0x30] sm:$0xff]
  %v525 = vld [vmem:[%s3 + $0x38] sm:$0xff]
  %v526 = vld [vmem:[%s3 + $0x40] sm:$0xff]
  %v527 = vld [vmem:[%s3 + $0x48] sm:$0xff]
  %v528 = vld [vmem:[%s3 + $0x50] sm:$0xff]
  %v529 = vld [vmem:[%s3 + $0x58] sm:$0xff]
  %v530 = vld [vmem:[%s3 + $0x60] sm:$0xff]
  %v531 = vld [vmem:[%s3 + $0x68] sm:$0xff]
  %v532 = vld [vmem:[%s3 + $0x70] sm:$0xff]
  %v533 = vld [vmem:[%s3 + $0x78] sm:$0xff]
  %v534 = vld [vmem:[%s3 + $0x80] sm:$0xff]
  %v535 = vld [vmem:[%s3 + $0x88] sm:$0xff]
  %v536 = vld [vmem:[%s3 + $0x90] sm:$0xff]
  %v537 = vld [vmem:[%s3 + $0x98] sm:$0xff]
  %v538 = vld [vmem:[%s3 + $0xa0] sm:$0xff]
  %v539 = vld [vmem:[%s3 + $0xa8] sm:$0xff]
  %v540 = vld [vmem:[%s3 + $0xb0] sm:$0xff]
  %v541 = vld [vmem:[%s3 + $0xb8] sm:$0xff]
  %v542 = vld [vmem:[%s3 + $0xc0] sm:$0xff]
  %v543 = vld [vmem:[%s3 + $0xc8] sm:$0xff]
  %v544 = vld [vmem:[%s3 + $0xd0] sm:$0xff]
  %v545 = vld [vmem:[%s3 + $0xd8] sm:$0xff]
  %v546 = vld [vmem:[%s3 + $0xe0] sm:$0xff]
  %v547 = vld [vmem:[%s3 + $0xe8] sm:$0xff]
  %v548 = vld [vmem:[%s3 + $0xf0] sm:$0xff]
  %v549 = vld [vmem:[%s3 + $0xf8] sm:$0xff]
  %v550 = vld [vmem:[%s3 + $0x100] sm:$0xff]
  %v551 = vld [vmem:[%s3 + $0x108] sm:$0xff]
  %v552 = vld [vmem:[%s3 + $0x110] sm:$0xff]
  %v553 = vld [vmem:[%s3 + $0x118] sm:$0xff]
  %v554 = vld [vmem:[%s3 + $0x120] sm:$0xff]
  %v555 = vld [vmem:[%s3 + $0x128] sm:$0xff]
  %v556 = vld [vmem:[%s3 + $0x130] sm:$0xff]
  %v557 = vld [vmem:[%s3 + $0x138] sm:$0xff]
  %v558 = vld [vmem:[%s4] sm:$0x1]
  %v559 = vld [vmem:[%s4 + $0x1] sm:$0x1]
  %v560 = vld [vmem:[%s4 + $0x2] sm:$0x1]
  %v561 = vld [vmem:[%s4 + $0x3] sm:$0x1]
  %v562 = vld [vmem:[%s4 + $0x4] sm:$0x1]
  %v563 = vld [vmem:[%s4 + $0x5] sm:$0x1]
  %v564 = vld [vmem:[%s4 + $0x6] sm:$0x1]
  %v565 = vld [vmem:[%s4 + $0x7] sm:$0x1]
  %v574 = vperm.slane %v558, 0
  %v575 = vperm.slane %v559, 0
  %v576 = vperm.slane %v560, 0
  %v577 = vperm.slane %v561, 0
  %v578 = vperm.slane %v562, 0
  %v579 = vperm.slane %v563, 0
  %v580 = vperm.slane %v564, 0
  %v581 = vperm.slane %v565, 0
  %v591 = vsel %vm108, %v510, 0
  %593 = vmatpush.msra.mxu0 0.0
  %594 = vmatpush.msra.mxu0 0.0
  %595 = vmatpush.msra.mxu0 0.0
  %596 = vmatpush.msra.mxu0 0.0
  %597 = vmatpush.msra.mxu0 0.0
  %598 = vmatpush.msra.mxu0 0.0
  %599 = vmatpush.msra.mxu0 0.0
  %600 = vmatpush.msra.mxu0 0.0
  %601 = vmatpush.msra.mxu0 0.0
  %602 = vmatpush.msra.mxu0 0.0
  %603 = vmatpush.msra.mxu0 0.0
  %604 = vmatpush.msra.mxu0 %v522
  %605 = vmatpush.msra.mxu0 %v521
  %606 = vmatpush.msra.mxu0 %v520
  %607 = vmatpush.msra.mxu0 %v519
  %608 = vmatpush.msra.mxu0 %v518
  %609 = vmatmul.f32.gmra.mxu0 %v591
  %v610 = vpop.f32.mrf.mxu0
  %v611 = vadd.f32 %v574, %v610
  %612 = vdwg.mxu0
  %v614 = vsel %vm108, %v511, 0
  %616 = vmatpush.msra.mxu0 0.0
  %617 = vmatpush.msra.mxu0 0.0
  %618 = vmatpush.msra.mxu0 0.0
  %619 = vmatpush.msra.mxu0 0.0
  %620 = vmatpush.msra.mxu0 0.0
  %621 = vmatpush.msra.mxu0 0.0
  %622 = vmatpush.msra.mxu0 0.0
  %623 = vmatpush.msra.mxu0 0.0
  %624 = vmatpush.msra.mxu0 0.0
  %625 = vmatpush.msra.mxu0 0.0
  %626 = vmatpush.msra.mxu0 0.0
  %627 = vmatpush.msra.mxu0 %v527
  %628 = vmatpush.msra.mxu0 %v526
  %629 = vmatpush.msra.mxu0 %v525
  %630 = vmatpush.msra.mxu0 %v524
  %631 = vmatpush.msra.mxu0 %v523
  %632 = vmatmul.f32.gmra.mxu0 %v614
  %v633 = vpop.f32.mrf.mxu0
  %v634 = vadd.f32 %v575, %v633
  %635 = vdwg.mxu0
  %v637 = vsel %vm108, %v512, 0
  %639 = vmatpush.msra.mxu0 0.0
  %640 = vmatpush.msra.mxu0 0.0
  %641 = vmatpush.msra.mxu0 0.0
  %642 = vmatpush.msra.mxu0 0.0
  %643 = vmatpush.msra.mxu0 0.0
  %644 = vmatpush.msra.mxu0 0.0
  %645 = vmatpush.msra.mxu0 0.0
  %646 = vmatpush.msra.mxu0 0.0
  %647 = vmatpush.msra.mxu0 0.0
  %648 = vmatpush.msra.mxu0 0.0
  %649 = vmatpush.msra.mxu0 0.0
  %650 = vmatpush.msra.mxu0 %v532
  %651 = vmatpush.msra.mxu0 %v531
  %652 = vmatpush.msra.mxu0 %v530
  %653 = vmatpush.msra.mxu0 %v529
  %654 = vmatpush.msra.mxu0 %v528
  %655 = vmatmul.f32.gmra.mxu0 %v637
  %v656 = vpop.f32.mrf.mxu0
  %v657 = vadd.f32 %v576, %v656
  %658 = vdwg.mxu0
  %v660 = vsel %vm108, %v513, 0
  %662 = vmatpush.msra.mxu0 0.0
  %663 = vmatpush.msra.mxu0 0.0
  %664 = vmatpush.msra.mxu0 0.0
  %665 = vmatpush.msra.mxu0 0.0
  %666 = vmatpush.msra.mxu0 0.0
  %667 = vmatpush.msra.mxu0 0.0
  %668 = vmatpush.msra.mxu0 0.0
  %669 = vmatpush.msra.mxu0 0.0
  %670 = vmatpush.msra.mxu0 0.0
  %671 = vmatpush.msra.mxu0 0.0
  %672 = vmatpush.msra.mxu0 0.0
  %673 = vmatpush.msra.mxu0 %v537
  %674 = vmatpush.msra.mxu0 %v536
  %675 = vmatpush.msra.mxu0 %v535
  %676 = vmatpush.msra.mxu0 %v534
  %677 = vmatpush.msra.mxu0 %v533
  %678 = vmatmul.f32.gmra.mxu0 %v660
  %v679 = vpop.f32.mrf.mxu0
  %v680 = vadd.f32 %v577, %v679
  %681 = vdwg.mxu0
  %v683 = vsel %vm108, %v514, 0
  %685 = vmatpush.msra.mxu0 0.0
  %686 = vmatpush.msra.mxu0 0.0
  %687 = vmatpush.msra.mxu0 0.0
  %688 = vmatpush.msra.mxu0 0.0
  %689 = vmatpush.msra.mxu0 0.0
  %690 = vmatpush.msra.mxu0 0.0
  %691 = vmatpush.msra.mxu0 0.0
  %692 = vmatpush.msra.mxu0 0.0
  %693 = vmatpush.msra.mxu0 0.0
  %694 = vmatpush.msra.mxu0 0.0
  %695 = vmatpush.msra.mxu0 0.0
  %696 = vmatpush.msra.mxu0 %v542
  %697 = vmatpush.msra.mxu0 %v541
  %698 = vmatpush.msra.mxu0 %v540
  %699 = vmatpush.msra.mxu0 %v539
  %700 = vmatpush.msra.mxu0 %v538
  %701 = vmatmul.f32.gmra.mxu0 %v683
  %v702 = vpop.f32.mrf.mxu0
  %v703 = vadd.f32 %v578, %v702
  %704 = vdwg.mxu0
  %v706 = vsel %vm108, %v515, 0
  %708 = vmatpush.msra.mxu0 0.0
  %709 = vmatpush.msra.mxu0 0.0
  %710 = vmatpush.msra.mxu0 0.0
  %711 = vmatpush.msra.mxu0 0.0
  %712 = vmatpush.msra.mxu0 0.0
  %713 = vmatpush.msra.mxu0 0.0
  %714 = vmatpush.msra.mxu0 0.0
  %715 = vmatpush.msra.mxu0 0.0
  %716 = vmatpush.msra.mxu0 0.0
  %717 = vmatpush.msra.mxu0 0.0
  %718 = vmatpush.msra.mxu0 0.0
  %719 = vmatpush.msra.mxu0 %v547
  %720 = vmatpush.msra.mxu0 %v546
  %721 = vmatpush.msra.mxu0 %v545
  %722 = vmatpush.msra.mxu0 %v544
  %723 = vmatpush.msra.mxu0 %v543
  %724 = vmatmul.f32.gmra.mxu0 %v706
  %v725 = vpop.f32.mrf.mxu0
  %v726 = vadd.f32 %v579, %v725
  %727 = vdwg.mxu0
  %v729 = vsel %vm108, %v516, 0
  %731 = vmatpush.msra.mxu0 0.0
  %732 = vmatpush.msra.mxu0 0.0
  %733 = vmatpush.msra.mxu0 0.0
  %734 = vmatpush.msra.mxu0 0.0
  %735 = vmatpush.msra.mxu0 0.0
  %736 = vmatpush.msra.mxu0 0.0
  %737 = vmatpush.msra.mxu0 0.0
  %738 = vmatpush.msra.mxu0 0.0
  %739 = vmatpush.msra.mxu0 0.0
  %740 = vmatpush.msra.mxu0 0.0
  %741 = vmatpush.msra.mxu0 0.0
  %742 = vmatpush.msra.mxu0 %v552
  %743 = vmatpush.msra.mxu0 %v551
  %744 = vmatpush.msra.mxu0 %v550
  %745 = vmatpush.msra.mxu0 %v549
  %746 = vmatpush.msra.mxu0 %v548
  %747 = vmatmul.f32.gmra.mxu0 %v729
  %v748 = vpop.f32.mrf.mxu0
  %v749 = vadd.f32 %v580, %v748
  %750 = vdwg.mxu0
  %v752 = vsel %vm108, %v517, 0
  %754 = vmatpush.msra.mxu0 0.0
  %755 = vmatpush.msra.mxu0 0.0
  %756 = vmatpush.msra.mxu0 0.0
  %757 = vmatpush.msra.mxu0 0.0
  %758 = vmatpush.msra.mxu0 0.0
  %759 = vmatpush.msra.mxu0 0.0
  %760 = vmatpush.msra.mxu0 0.0
  %761 = vmatpush.msra.mxu0 0.0
  %762 = vmatpush.msra.mxu0 0.0
  %763 = vmatpush.msra.mxu0 0.0
  %764 = vmatpush.msra.mxu0 0.0
  %765 = vmatpush.msra.mxu0 %v557
  %766 = vmatpush.msra.mxu0 %v556
  %767 = vmatpush.msra.mxu0 %v555
  %768 = vmatpush.msra.mxu0 %v554
  %769 = vmatpush.msra.mxu0 %v553
  %770 = vmatmul.f32.gmra.mxu0 %v752
  %v771 = vpop.f32.mrf.mxu0
  %v772 = vadd.f32 %v581, %v771
  %773 = vdwg.mxu0
  %v774 = vtanh.pop %v611
  %v775 = vtanh.pop %v634
  %v776 = vtanh.pop %v657
  %v777 = vtanh.pop %v680
  %v778 = vtanh.pop %v703
  %v779 = vtanh.pop %v726
  %v780 = vtanh.pop %v749
  %v781 = vtanh.pop %v772
  %v782 = vsub.f32 %v774, %v28
  %v783 = vsub.f32 %v775, %v29
  %v784 = vsub.f32 %v776, %v30
  %v785 = vsub.f32 %v777, %v31
  %v786 = vsub.f32 %v778, %v32
  %v787 = vsub.f32 %v779, %v33
  %v788 = vsub.f32 %v780, %v34
  %v789 = vsub.f32 %v781, %v35
  %v790 = vmul.f32 %v339, %v782
  %v791 = vmul.f32 %v354, %v783
  %v792 = vmul.f32 %v369, %v784
  %v793 = vmul.f32 %v384, %v785
  %v794 = vmul.f32 %v399, %v786
  %v795 = vmul.f32 %v414, %v787
  %v796 = vmul.f32 %v429, %v788
  %v797 = vmul.f32 %v444, %v789
  %v798 = vadd.f32 %v28, %v790
  %v799 = vadd.f32 %v29, %v791
  %v800 = vadd.f32 %v30, %v792
  %v801 = vadd.f32 %v31, %v793
  %v802 = vadd.f32 %v32, %v794
  %v803 = vadd.f32 %v33, %v795
  %v804 = vadd.f32 %v34, %v796
  %v805 = vadd.f32 %v35, %v797
  %v806 = vld [vmem:[%s5] sm:$0xff]
  %v807 = vld [vmem:[%s5 + $0x8] sm:$0xff]
  %v808 = vld [vmem:[%s5 + $0x10] sm:$0xff]
  %v809 = vld [vmem:[%s5 + $0x18] sm:$0xff]
  %v810 = vld [vmem:[%s5 + $0x20] sm:$0xff]
  %v811 = vld [vmem:[%s5 + $0x28] sm:$0xff]
  %v812 = vld [vmem:[%s5 + $0x30] sm:$0xff]
  %v813 = vld [vmem:[%s5 + $0x38] sm:$0xff]
  %v814 = vld [vmem:[%s5 + $0x40] sm:$0xff]
  %v815 = vld [vmem:[%s5 + $0x48] sm:$0xff]
  %v816 = vld [vmem:[%s5 + $0x50] sm:$0xff]
  %v817 = vld [vmem:[%s5 + $0x58] sm:$0xff]
  %v818 = vld [vmem:[%s5 + $0x60] sm:$0xff]
  %v819 = vld [vmem:[%s5 + $0x68] sm:$0xff]
  %v820 = vld [vmem:[%s5 + $0x70] sm:$0xff]
  %v821 = vld [vmem:[%s5 + $0x78] sm:$0xff]
  %v822 = vld [vmem:[%s5 + $0x80] sm:$0xff]
  %v823 = vld [vmem:[%s5 + $0x88] sm:$0xff]
  %v824 = vld [vmem:[%s5 + $0x90] sm:$0xff]
  %v825 = vld [vmem:[%s5 + $0x98] sm:$0xff]
  %v826 = vld [vmem:[%s5 + $0xa0] sm:$0xff]
  %v827 = vld [vmem:[%s5 + $0xa8] sm:$0xff]
  %v828 = vld [vmem:[%s5 + $0xb0] sm:$0xff]
  %v829 = vld [vmem:[%s5 + $0xb8] sm:$0xff]
  %v830 = vld [vmem:[%s5 + $0xc0] sm:$0xff]
  %v831 = vld [vmem:[%s5 + $0xc8] sm:$0xff]
  %v832 = vld [vmem:[%s5 + $0xd0] sm:$0xff]
  %v833 = vld [vmem:[%s5 + $0xd8] sm:$0xff]
  %v834 = vld [vmem:[%s5 + $0xe0] sm:$0xff]
  %v835 = vld [vmem:[%s5 + $0xe8] sm:$0xff]
  %v836 = vld [vmem:[%s5 + $0xf0] sm:$0xff]
  %v837 = vld [vmem:[%s5 + $0xf8] sm:$0xff]
  %v838 = vld [vmem:[%s6] sm:$0x1]
  %v839 = vld [vmem:[%s6 + $0x1] sm:$0x1]
  %v840 = vld [vmem:[%s6 + $0x2] sm:$0x1]
  %v841 = vld [vmem:[%s6 + $0x3] sm:$0x1]
  %v842 = vld [vmem:[%s6 + $0x4] sm:$0x1]
  %v843 = vld [vmem:[%s6 + $0x5] sm:$0x1]
  %v844 = vld [vmem:[%s6 + $0x6] sm:$0x1]
  %v845 = vld [vmem:[%s6 + $0x7] sm:$0x1]
  %v854 = vperm.slane %v838, 0
  %v855 = vperm.slane %v839, 0
  %v856 = vperm.slane %v840, 0
  %v857 = vperm.slane %v841, 0
  %v858 = vperm.slane %v842, 0
  %v859 = vperm.slane %v843, 0
  %v860 = vperm.slane %v844, 0
  %v861 = vperm.slane %v845, 0
  %v871 = vsel %vm509, %v798, 0
  %873 = vmatpush.msra.mxu0 0.0
  %874 = vmatpush.msra.mxu0 0.0
  %875 = vmatpush.msra.mxu0 0.0
  %876 = vmatpush.msra.mxu0 0.0
  %877 = vmatpush.msra.mxu0 0.0
  %878 = vmatpush.msra.mxu0 0.0
  %879 = vmatpush.msra.mxu0 0.0
  %880 = vmatpush.msra.mxu0 0.0
  %881 = vmatpush.msra.mxu0 0.0
  %882 = vmatpush.msra.mxu0 0.0
  %883 = vmatpush.msra.mxu0 0.0
  %884 = vmatpush.msra.mxu0 0.0
  %885 = vmatpush.msra.mxu0 %v809
  %886 = vmatpush.msra.mxu0 %v808
  %887 = vmatpush.msra.mxu0 %v807
  %888 = vmatpush.msra.mxu0 %v806
  %889 = vmatmul.f32.gmra.mxu0 %v871
  %v890 = vpop.f32.mrf.mxu0
  %v891 = vadd.f32 %v854, %v890
  %892 = vdwg.mxu0
  %v894 = vsel %vm509, %v799, 0
  %896 = vmatpush.msra.mxu0 0.0
  %897 = vmatpush.msra.mxu0 0.0
  %898 = vmatpush.msra.mxu0 0.0
  %899 = vmatpush.msra.mxu0 0.0
  %900 = vmatpush.msra.mxu0 0.0
  %901 = vmatpush.msra.mxu0 0.0
  %902 = vmatpush.msra.mxu0 0.0
  %903 = vmatpush.msra.mxu0 0.0
  %904 = vmatpush.msra.mxu0 0.0
  %905 = vmatpush.msra.mxu0 0.0
  %906 = vmatpush.msra.mxu0 0.0
  %907 = vmatpush.msra.mxu0 0.0
  %908 = vmatpush.msra.mxu0 %v813
  %909 = vmatpush.msra.mxu0 %v812
  %910 = vmatpush.msra.mxu0 %v811
  %911 = vmatpush.msra.mxu0 %v810
  %912 = vmatmul.f32.gmra.mxu0 %v894
  %v913 = vpop.f32.mrf.mxu0
  %v914 = vadd.f32 %v855, %v913
  %915 = vdwg.mxu0
  %v917 = vsel %vm509, %v800, 0
  %919 = vmatpush.msra.mxu0 0.0
  %920 = vmatpush.msra.mxu0 0.0
  %921 = vmatpush.msra.mxu0 0.0
  %922 = vmatpush.msra.mxu0 0.0
  %923 = vmatpush.msra.mxu0 0.0
  %924 = vmatpush.msra.mxu0 0.0
  %925 = vmatpush.msra.mxu0 0.0
  %926 = vmatpush.msra.mxu0 0.0
  %927 = vmatpush.msra.mxu0 0.0
  %928 = vmatpush.msra.mxu0 0.0
  %929 = vmatpush.msra.mxu0 0.0
  %930 = vmatpush.msra.mxu0 0.0
  %931 = vmatpush.msra.mxu0 %v817
  %932 = vmatpush.msra.mxu0 %v816
  %933 = vmatpush.msra.mxu0 %v815
  %934 = vmatpush.msra.mxu0 %v814
  %935 = vmatmul.f32.gmra.mxu0 %v917
  %v936 = vpop.f32.mrf.mxu0
  %v937 = vadd.f32 %v856, %v936
  %938 = vdwg.mxu0
  %v940 = vsel %vm509, %v801, 0
  %942 = vmatpush.msra.mxu0 0.0
  %943 = vmatpush.msra.mxu0 0.0
  %944 = vmatpush.msra.mxu0 0.0
  %945 = vmatpush.msra.mxu0 0.0
  %946 = vmatpush.msra.mxu0 0.0
  %947 = vmatpush.msra.mxu0 0.0
  %948 = vmatpush.msra.mxu0 0.0
  %949 = vmatpush.msra.mxu0 0.0
  %950 = vmatpush.msra.mxu0 0.0
  %951 = vmatpush.msra.mxu0 0.0
  %952 = vmatpush.msra.mxu0 0.0
  %953 = vmatpush.msra.mxu0 0.0
  %954 = vmatpush.msra.mxu0 %v821
  %955 = vmatpush.msra.mxu0 %v820
  %956 = vmatpush.msra.mxu0 %v819
  %957 = vmatpush.msra.mxu0 %v818
  %958 = vmatmul.f32.gmra.mxu0 %v940
  %v959 = vpop.f32.mrf.mxu0
  %v960 = vadd.f32 %v857, %v959
  %961 = vdwg.mxu0
  %v963 = vsel %vm509, %v802, 0
  %965 = vmatpush.msra.mxu0 0.0
  %966 = vmatpush.msra.mxu0 0.0
  %967 = vmatpush.msra.mxu0 0.0
  %968 = vmatpush.msra.mxu0 0.0
  %969 = vmatpush.msra.mxu0 0.0
  %970 = vmatpush.msra.mxu0 0.0
  %971 = vmatpush.msra.mxu0 0.0
  %972 = vmatpush.msra.mxu0 0.0
  %973 = vmatpush.msra.mxu0 0.0
  %974 = vmatpush.msra.mxu0 0.0
  %975 = vmatpush.msra.mxu0 0.0
  %976 = vmatpush.msra.mxu0 0.0
  %977 = vmatpush.msra.mxu0 %v825
  %978 = vmatpush.msra.mxu0 %v824
  %979 = vmatpush.msra.mxu0 %v823
  %980 = vmatpush.msra.mxu0 %v822
  %981 = vmatmul.f32.gmra.mxu0 %v963
  %v982 = vpop.f32.mrf.mxu0
  %v983 = vadd.f32 %v858, %v982
  %984 = vdwg.mxu0
  %v986 = vsel %vm509, %v803, 0
  %988 = vmatpush.msra.mxu0 0.0
  %989 = vmatpush.msra.mxu0 0.0
  %990 = vmatpush.msra.mxu0 0.0
  %991 = vmatpush.msra.mxu0 0.0
  %992 = vmatpush.msra.mxu0 0.0
  %993 = vmatpush.msra.mxu0 0.0
  %994 = vmatpush.msra.mxu0 0.0
  %995 = vmatpush.msra.mxu0 0.0
  %996 = vmatpush.msra.mxu0 0.0
  %997 = vmatpush.msra.mxu0 0.0
  %998 = vmatpush.msra.mxu0 0.0
  %999 = vmatpush.msra.mxu0 0.0
  %1000 = vmatpush.msra.mxu0 %v829
  %1001 = vmatpush.msra.mxu0 %v828
  %1002 = vmatpush.msra.mxu0 %v827
  %1003 = vmatpush.msra.mxu0 %v826
  %1004 = vmatmul.f32.gmra.mxu0 %v986
  %v1005 = vpop.f32.mrf.mxu0
  %v1006 = vadd.f32 %v859, %v1005
  %1007 = vdwg.mxu0
  %v1009 = vsel %vm509, %v804, 0
  %1011 = vmatpush.msra.mxu0 0.0
  %1012 = vmatpush.msra.mxu0 0.0
  %1013 = vmatpush.msra.mxu0 0.0
  %1014 = vmatpush.msra.mxu0 0.0
  %1015 = vmatpush.msra.mxu0 0.0
  %1016 = vmatpush.msra.mxu0 0.0
  %1017 = vmatpush.msra.mxu0 0.0
  %1018 = vmatpush.msra.mxu0 0.0
  %1019 = vmatpush.msra.mxu0 0.0
  %1020 = vmatpush.msra.mxu0 0.0
  %1021 = vmatpush.msra.mxu0 0.0
  %1022 = vmatpush.msra.mxu0 0.0
  %1023 = vmatpush.msra.mxu0 %v833
  %1024 = vmatpush.msra.mxu0 %v832
  %1025 = vmatpush.msra.mxu0 %v831
  %1026 = vmatpush.msra.mxu0 %v830
  %1027 = vmatmul.f32.gmra.mxu0 %v1009
  %v1028 = vpop.f32.mrf.mxu0
  %v1029 = vadd.f32 %v860, %v1028
  %1030 = vdwg.mxu0
  %v1032 = vsel %vm509, %v805, 0
  %1034 = vmatpush.msra.mxu0 0.0
  %1035 = vmatpush.msra.mxu0 0.0
  %1036 = vmatpush.msra.mxu0 0.0
  %1037 = vmatpush.msra.mxu0 0.0
  %1038 = vmatpush.msra.mxu0 0.0
  %1039 = vmatpush.msra.mxu0 0.0
  %1040 = vmatpush.msra.mxu0 0.0
  %1041 = vmatpush.msra.mxu0 0.0
  %1042 = vmatpush.msra.mxu0 0.0
  %1043 = vmatpush.msra.mxu0 0.0
  %1044 = vmatpush.msra.mxu0 0.0
  %1045 = vmatpush.msra.mxu0 0.0
  %1046 = vmatpush.msra.mxu0 %v837
  %1047 = vmatpush.msra.mxu0 %v836
  %1048 = vmatpush.msra.mxu0 %v835
  %1049 = vmatpush.msra.mxu0 %v834
  %1050 = vmatmul.f32.gmra.mxu0 %v1032
  %v1051 = vpop.f32.mrf.mxu0
  %v1052 = vadd.f32 %v861, %v1051
  %1053 = vdwg.mxu0
  %v1054 = vxor.u32 %v891, 2147483648
  %v1055 = vxor.u32 %v914, 2147483648
  %v1056 = vxor.u32 %v937, 2147483648
  %v1057 = vxor.u32 %v960, 2147483648
  %v1058 = vxor.u32 %v983, 2147483648
  %v1059 = vxor.u32 %v1006, 2147483648
  %v1060 = vxor.u32 %v1029, 2147483648
  %v1061 = vxor.u32 %v1052, 2147483648
  %v1062 = vmul.f32 %v1054, 1.442695
  %v1063 = vpow.pop %v1062
  %v1064 = vmul.f32 %v1055, 1.442695
  %v1065 = vpow.pop %v1064
  %v1066 = vmul.f32 %v1056, 1.442695
  %v1067 = vpow.pop %v1066
  %v1068 = vmul.f32 %v1057, 1.442695
  %v1069 = vpow.pop %v1068
  %v1070 = vmul.f32 %v1058, 1.442695
  %v1071 = vpow.pop %v1070
  %v1072 = vmul.f32 %v1059, 1.442695
  %v1073 = vpow.pop %v1072
  %v1074 = vmul.f32 %v1060, 1.442695
  %v1075 = vpow.pop %v1074
  %v1076 = vmul.f32 %v1061, 1.442695
  %v1077 = vpow.pop %v1076
  %v1078 = vadd.f32 %v1063, 1.0
  %v1079 = vadd.f32 %v1065, 1.0
  %v1080 = vadd.f32 %v1067, 1.0
  %v1081 = vadd.f32 %v1069, 1.0
  %v1082 = vadd.f32 %v1071, 1.0
  %v1083 = vadd.f32 %v1073, 1.0
  %v1084 = vadd.f32 %v1075, 1.0
  %v1085 = vadd.f32 %v1077, 1.0
  %v1086 = vrcp.pop %v1078
  %v1087 = vmul.f32 %v1078, %v1086
  %v1088 = vsub.f32 1.0, %v1087
  %v1089 = vmul.f32 %v1086, %v1088
  %v1090 = vadd.f32 %v1086, %v1089
  %vm1091 = vweird.f32 %v1078
  %vm1092 = vweird.f32 %v1086
  %vm1093 = vmor %vm1091, %vm1092
  %v1094 = vsel %vm1093, %v1086, %v1090
  %v1095 = vand.u32 2147483647, %v1078
  %vm1096 = vcmp.eq.f32.partialorder %v1095, 8.507059e+37
  %v1097 = vand.u32 %v1078, 2147483648
  %v1098 = vor.u32 1.1754944e-38, %v1097
  %v1099 = vsel %vm1096, %v1098, %v1094
  %v1100 = vmul.f32 1.0, %v1099
  %v1101 = vrcp.pop %v1079
  %v1102 = vmul.f32 %v1079, %v1101
  %v1103 = vsub.f32 1.0, %v1102
  %v1104 = vmul.f32 %v1101, %v1103
  %v1105 = vadd.f32 %v1101, %v1104
  %vm1106 = vweird.f32 %v1079
  %vm1107 = vweird.f32 %v1101
  %vm1108 = vmor %vm1106, %vm1107
  %v1109 = vsel %vm1108, %v1101, %v1105
  %v1110 = vand.u32 2147483647, %v1079
  %vm1111 = vcmp.eq.f32.partialorder %v1110, 8.507059e+37
  %v1112 = vand.u32 %v1079, 2147483648
  %v1113 = vor.u32 1.1754944e-38, %v1112
  %v1114 = vsel %vm1111, %v1113, %v1109
  %v1115 = vmul.f32 1.0, %v1114
  %v1116 = vrcp.pop %v1080
  %v1117 = vmul.f32 %v1080, %v1116
  %v1118 = vsub.f32 1.0, %v1117
  %v1119 = vmul.f32 %v1116, %v1118
  %v1120 = vadd.f32 %v1116, %v1119
  %vm1121 = vweird.f32 %v1080
  %vm1122 = vweird.f32 %v1116
  %vm1123 = vmor %vm1121, %vm1122
  %v1124 = vsel %vm1123, %v1116, %v1120
  %v1125 = vand.u32 2147483647, %v1080
  %vm1126 = vcmp.eq.f32.partialorder %v1125, 8.507059e+37
  %v1127 = vand.u32 %v1080, 2147483648
  %v1128 = vor.u32 1.1754944e-38, %v1127
  %v1129 = vsel %vm1126, %v1128, %v1124
  %v1130 = vmul.f32 1.0, %v1129
  %v1131 = vrcp.pop %v1081
  %v1132 = vmul.f32 %v1081, %v1131
  %v1133 = vsub.f32 1.0, %v1132
  %v1134 = vmul.f32 %v1131, %v1133
  %v1135 = vadd.f32 %v1131, %v1134
  %vm1136 = vweird.f32 %v1081
  %vm1137 = vweird.f32 %v1131
  %vm1138 = vmor %vm1136, %vm1137
  %v1139 = vsel %vm1138, %v1131, %v1135
  %v1140 = vand.u32 2147483647, %v1081
  %vm1141 = vcmp.eq.f32.partialorder %v1140, 8.507059e+37
  %v1142 = vand.u32 %v1081, 2147483648
  %v1143 = vor.u32 1.1754944e-38, %v1142
  %v1144 = vsel %vm1141, %v1143, %v1139
  %v1145 = vmul.f32 1.0, %v1144
  %v1146 = vrcp.pop %v1082
  %v1147 = vmul.f32 %v1082, %v1146
  %v1148 = vsub.f32 1.0, %v1147
  %v1149 = vmul.f32 %v1146, %v1148
  %v1150 = vadd.f32 %v1146, %v1149
  %vm1151 = vweird.f32 %v1082
  %vm1152 = vweird.f32 %v1146
  %vm1153 = vmor %vm1151, %vm1152
  %v1154 = vsel %vm1153, %v1146, %v1150
  %v1155 = vand.u32 2147483647, %v1082
  %vm1156 = vcmp.eq.f32.partialorder %v1155, 8.507059e+37
  %v1157 = vand.u32 %v1082, 2147483648
  %v1158 = vor.u32 1.1754944e-38, %v1157
  %v1159 = vsel %vm1156, %v1158, %v1154
  %v1160 = vmul.f32 1.0, %v1159
  %v1161 = vrcp.pop %v1083
  %v1162 = vmul.f32 %v1083, %v1161
  %v1163 = vsub.f32 1.0, %v1162
  %v1164 = vmul.f32 %v1161, %v1163
  %v1165 = vadd.f32 %v1161, %v1164
  %vm1166 = vweird.f32 %v1083
  %vm1167 = vweird.f32 %v1161
  %vm1168 = vmor %vm1166, %vm1167
  %v1169 = vsel %vm1168, %v1161, %v1165
  %v1170 = vand.u32 2147483647, %v1083
  %vm1171 = vcmp.eq.f32.partialorder %v1170, 8.507059e+37
  %v1172 = vand.u32 %v1083, 2147483648
  %v1173 = vor.u32 1.1754944e-38, %v1172
  %v1174 = vsel %vm1171, %v1173, %v1169
  %v1175 = vmul.f32 1.0, %v1174
  %v1176 = vrcp.pop %v1084
  %v1177 = vmul.f32 %v1084, %v1176
  %v1178 = vsub.f32 1.0, %v1177
  %v1179 = vmul.f32 %v1176, %v1178
  %v1180 = vadd.f32 %v1176, %v1179
  %vm1181 = vweird.f32 %v1084
  %vm1182 = vweird.f32 %v1176
  %vm1183 = vmor %vm1181, %vm1182
  %v1184 = vsel %vm1183, %v1176, %v1180
  %v1185 = vand.u32 2147483647, %v1084
  %vm1186 = vcmp.eq.f32.partialorder %v1185, 8.507059e+37
  %v1187 = vand.u32 %v1084, 2147483648
  %v1188 = vor.u32 1.1754944e-38, %v1187
  %v1189 = vsel %vm1186, %v1188, %v1184
  %v1190 = vmul.f32 1.0, %v1189
  %v1191 = vrcp.pop %v1085
  %v1192 = vmul.f32 %v1085, %v1191
  %v1193 = vsub.f32 1.0, %v1192
  %v1194 = vmul.f32 %v1191, %v1193
  %v1195 = vadd.f32 %v1191, %v1194
  %vm1196 = vweird.f32 %v1085
  %vm1197 = vweird.f32 %v1191
  %vm1198 = vmor %vm1196, %vm1197
  %v1199 = vsel %vm1198, %v1191, %v1195
  %v1200 = vand.u32 2147483647, %v1085
  %vm1201 = vcmp.eq.f32.partialorder %v1200, 8.507059e+37
  %v1202 = vand.u32 %v1085, 2147483648
  %v1203 = vor.u32 1.1754944e-38, %v1202
  %v1204 = vsel %vm1201, %v1203, %v1199
  %v1205 = vmul.f32 1.0, %v1204
  %v1214 = vrot.slane %v1115, 7
  %vm1215 = vcmask 1041409
  %v1216 = vsel %vm1215, %v1214, %v1100
  %v1217 = vrot.slane %v1130, 6
  %vm1218 = vcmask 1042434
  %v1219 = vsel %vm1218, %v1217, %v1216
  %v1220 = vrot.slane %v1145, 5
  %vm1221 = vcmask 1043459
  %v1222 = vsel %vm1221, %v1220, %v1219
  %v1223 = vrot.slane %v1160, 4
  %vm1224 = vcmask 1044484
  %v1225 = vsel %vm1224, %v1223, %v1222
  %v1226 = vrot.slane %v1175, 3
  %vm1227 = vcmask 1045509
  %v1228 = vsel %vm1227, %v1226, %v1225
  %v1229 = vrot.slane %v1190, 2
  %vm1230 = vcmask 1046534
  %v1231 = vsel %vm1230, %v1229, %v1228
  %v1232 = vrot.slane %v1205, 1
  %vm1233 = vcmask 1047559
  %v1234 = vsel %vm1233, %v1232, %v1231
  %vm1236 = vcmask 64512
  %1237 = vst.msk [vmem:[%s7] sm:$0xff] %vm1236, %v1234
  %v1238 = vrot.slane %v799, 7
  %v1239 = vsel %vm1215, %v1238, %v798
  %v1240 = vrot.slane %v800, 6
  %v1241 = vsel %vm1218, %v1240, %v1239
  %v1242 = vrot.slane %v801, 5
  %v1243 = vsel %vm1221, %v1242, %v1241
  %v1244 = vrot.slane %v802, 4
  %v1245 = vsel %vm1224, %v1244, %v1243
  %v1246 = vrot.slane %v803, 3
  %v1247 = vsel %vm1227, %v1246, %v1245
  %v1248 = vrot.slane %v804, 2
  %v1249 = vsel %vm1230, %v1248, %v1247
  %v1250 = vrot.slane %v805, 1
  %v1251 = vsel %vm1233, %v1250, %v1249
  %1253 = vst.msk [vmem:[%s8] sm:$0xff] %vm509, %v1251
  %v1254 = vsel %vm1218, %v1214, %v1100
  %v1255 = vsel %vm1221, %v1217, %v1254
  %v1256 = vsel %vm1224, %v1220, %v1255
  %v1257 = vsel %vm1227, %v1223, %v1256
  %v1258 = vsel %vm1230, %v1226, %v1257
  %v1259 = vsel %vm1233, %v1229, %v1258
  %s1262 = scalar_lea.vmem %s7, 8
  %vm1263 = vcmask 64513
  %1264 = vst.msk [vmem:[%s1262 - $0x1] sm:$0xfe] %vm1263, %v1259
  %vm1265 = vcmask 57344
  %1266 = vst.msk [vmem:[%s1262 + $0x7] sm:$0x1] %vm1265, %v1232
  %v1267 = vsel %vm1218, %v1238, %v798
  %v1268 = vsel %vm1221, %v1240, %v1267
  %v1269 = vsel %vm1224, %v1242, %v1268
  %v1270 = vsel %vm1227, %v1244, %v1269
  %v1271 = vsel %vm1230, %v1246, %v1270
  %v1272 = vsel %vm1233, %v1248, %v1271
  %s1275 = scalar_lea.vmem %s8, 8
  %vm1276 = vcmask 261121
  %1277 = vst.msk [vmem:[%s1275 - $0x1] sm:$0xfe] %vm1276, %v1272
  %vm1278 = vcmask 253952
  %1279 = vst.msk [vmem:[%s1275 + $0x7] sm:$0x1] %vm1278, %v1250
  // Predicated region
  $region30: #{propogator_forward.1} parent=0 // pred_check
    _
  $region31: #{propogator_forward.1} parent=0 // pred_check_branch
    %1281 = sbr.rel (0) target = $region33
  $region32: #{propogator_forward.1} parent=0 // pred_region
    _
  $region33: #{propogator_forward.1} parent=0 // pred_fallthru
    _
  // Predicated region
  $region34: #{propogator_forward.1} parent=0 // pred_check
    _
  $region35: #{propogator_forward.1} parent=0 // pred_check_branch
    %1283 = sbr.rel (0) target = $region37
  $region36: #{propogator_forward.1} parent=0 // pred_region
    _
  $region37: #{propogator_forward.1} parent=0 // pred_fallthru
    _
  // Predicated region
  $region38: #{propogator_forward.1} parent=0 // pred_check
    _
  $region39: #{propogator_forward.1} parent=0 // pred_check_branch
    %1285 = sbr.rel (0) target = $region41
  $region40: #{propogator_forward.1} parent=0 // pred_region
    _
  $region41: #{propogator_forward.1} parent=0 // pred_fallthru
    _
  // Predicated region
  $region42: #{propogator_forward.1} parent=0 // pred_check
    _
  $region43: #{propogator_forward.1} parent=0 // pred_check_branch
    %1287 = sbr.rel (0) target = $region45
  $region44: #{propogator_forward.1} parent=0 // pred_region
    _
  $region45: #{propogator_forward.1} parent=0 // pred_fallthru
    _

</llo_original>
